<compile_context>
chip_gen: v7x
topology: tpu7x:2x2x1
jax: 0.10.0
libtpu: 0.0.40
codegen_flags: <defaults>
</compile_context>

<pallas_src>
import functools

import numpy as np
import jax
import jax.numpy as jnp
from jax.experimental import pallas as pl
from jax.experimental.pallas import tpu as pltpu

# ---- synthetic action-space configuration (mirrors DictActionHead.__init__) ----
# "real"     : gym.spaces.Box(shape=(NB,))       -> NormalHead,          num_inputs = 2 * NB
# "discrete" : OneHotMultiDiscrete(nvec=[NC]*NA) -> MultiCategoricalHead, num_inputs = NA * NC
NB = 6          # Box action dimension
NA = 3          # number of categorical actions
NC = 5          # categories per categorical action
NUM_INPUTS = 2 * NB + NA * NC   # 27

INIT_STD = 1.0
MIN_STD = 0.01
RAW_INIT_STD = float(np.log(np.exp(INIT_STD) - 1.0))


def _make_kernel(chunk: int, nchunks: int):
    """Kernel over one (tile, NUM_INPUTS) input block -> (NUM_INPUTS, tile) output slab."""

    def kernel(x_ref, out_ref):
        # x_ref  : (tile, NUM_INPUTS)  -- original (batch, feature) layout
        # out_ref: (NUM_INPUTS, tile)  -- lane-dense transposed output slab

        @pl.loop(0, nchunks)
        def _(j):
            r = pl.multiple_of(j * chunk, 128)
            # On-chip transpose of a small chunk: batch -> lanes. XLU is idle here.
            xt = x_ref[pl.ds(r, chunk), :].T                    # (NUM_INPUTS, chunk)

            # ---- NormalHead ("real") ----
            out_ref[0:NB, pl.ds(r, chunk)] = xt[:NB, :]
            out_ref[NB:2 * NB, pl.ds(r, chunk)] = (
                jax.nn.softplus(xt[NB:2 * NB, :] + RAW_INIT_STD) + MIN_STD)

            # ---- MultiCategoricalHead ("discrete") ----
            for a in range(NA):                                  # static unroll, NA small
                lo = 2 * NB + a * NC
                grp = xt[lo:lo + NC, :]                          # (NC, chunk)
                grp = grp - jnp.mean(grp, axis=0, keepdims=True)  # center per group
                out_ref[lo:lo + NC, pl.ds(r, chunk)] = jnp.clip(grp, -4.0, 4.0)

    return kernel


def _round_up(x: int, m: int) -> int:
    return ((x + m - 1) // m) * m


def _cdiv(a: int, b: int) -> int:
    return -(-a // b)


@functools.partial(jax.jit, static_argnames=("tb",))
def dict_action_head(action_logits: jax.Array, *, tb: int = 16384):
    """Returns (normal_mean, normal_std, categorical_logits).

    normal_mean/std    : (B, NB)     — parameters of Independent(Normal, 1)
    categorical_logits : (B, NA, NC) — logits of Independent(OneHotCategorical, 1)
    """
    B, F = action_logits.shape
    assert F == NUM_INPUTS

    # tile-size guard: multiple of 128 lanes
    tb_cap = max(128, (int(tb) // 128) * 128)

    # pad batch only to a multiple of 128 (decoupled from the tile size)
    b_pad = _round_up(B, 128)
    n128 = b_pad // 128

    n_steps = _cdiv(b_pad, tb_cap)
    if n_steps == 1 and n128 >= 8:
        n_steps = 2                       # v7x: >=2 "parallel" steps -> both TensorCores
    tile = _cdiv(n128, n_steps) * 128     # per-step tile, multiple of 128, <= b_pad
    grid = _cdiv(b_pad, tile)             # last block may be partial (masked on store)

    chunk = 256 if tile % 256 == 0 else 128
    nchunks = tile // chunk

    x = action_logits
    if b_pad != B:
        x = jnp.pad(x, ((0, b_pad - B), (0, 0)))

    out_t = pl.pallas_call(
        _make_kernel(chunk, nchunks),
        out_shape=jax.ShapeDtypeStruct((NUM_INPUTS, b_pad), jnp.float32),
        grid=(grid,),
        in_specs=[pl.BlockSpec((tile, NUM_INPUTS), lambda i: (i, 0))],
        out_specs=pl.BlockSpec((NUM_INPUTS, tile), lambda i: (0, i)),
        compiler_params=pltpu.CompilerParams(
            dimension_semantics=("parallel",),
            vmem_limit_bytes=32 * 1024 * 1024),
    )(x)

    # Fused slice + transpose back to batch-major parameters.
    # TODO(synk): downstream consumers (sample / log_prob / entropy of the
    # distributions) could read the (NUM_INPUTS, B) slab directly and skip these
    # transposes entirely; kept batch-major here to match the module interface.
    mean = out_t[:NB, :B].T                                  # (B, NB)
    std = out_t[NB:2 * NB, :B].T                             # (B, NB)
    cat = out_t[2 * NB:, :B].T.reshape(B, NA, NC)            # (B, NA, NC)
    return mean, std, cat


def _reference(x):
    mean = x[:, :NB]
    std = jax.nn.softplus(x[:, NB:2 * NB] + RAW_INIT_STD) + MIN_STD
    cat = x[:, 2 * NB:].reshape(-1, NA, NC)
    cat = cat - cat.mean(axis=-1, keepdims=True)
    cat = jnp.clip(cat, -4.0, 4.0)
    return mean, std, cat


def _check(B: int, key, tb: int = 16384):
    x = jax.random.normal(key, (B, NUM_INPUTS), dtype=jnp.float32) * 3.0
    mean, std, cat = dict_action_head(x, tb=tb)
    jax.block_until_ready((mean, std, cat))
    r_mean, r_std, r_cat = _reference(x)
    np.testing.assert_allclose(np.asarray(mean), np.asarray(r_mean), rtol=1e-5, atol=1e-5)
    np.testing.assert_allclose(np.asarray(std), np.asarray(r_std), rtol=1e-5, atol=1e-5)
    np.testing.assert_allclose(np.asarray(cat), np.asarray(r_cat), rtol=1e-5, atol=1e-5)


if __name__ == "__main__":
    key = jax.random.PRNGKey(0)
    k1, k2, k3 = jax.random.split(key, 3)

    # tiny batch: pad 8 -> 128, single block, single inner chunk
    _check(B=8, key=k1)
    # non-multiple-of-128 batch: pad 300 -> 384, single block, 3 inner chunks
    _check(B=300, key=k2)
    # big enough to force 2 "parallel" grid steps + a partial tail block
    _check(B=1100, key=k3)
    # explicit small tile: multi-step grid
    _check(B=300, key=k2, tb=128)

    # TODO(synk): sampling / log_prob / entropy / mode of DictActionDist are
    # host-side distribution-object semantics, not part of the tensor forward.
    print("KERNEL_OK")
</pallas_src>

<mosaic_0001>
module attributes {stable_mosaic.version = 11 : i64} {
  func.func @kernel(%arg0: i32, %arg1: memref<128x27xf32, #tpu.memory_space<vmem>>, %arg2: memref<27x128xf32, #tpu.memory_space<vmem>>) attributes {dimension_semantics = [#tpu.dimension_semantics<parallel>], iteration_bounds = array<i64: 1>, scalar_prefetch = 0 : i64, scratch_operands = 0 : i64, tpu.core_type = #tpu.core_type<tc>, window_params = [{transform_indices = @transform_0, window_bounds = array<i64: 128, 27>}, {transform_indices = @transform_1, window_bounds = array<i64: 27, 128>}]} {
    %c0_i32 = arith.constant 0 : i32
    %c1_i32 = arith.constant 1 : i32
    %0 = arith.muli %c0_i32, %c1_i32 : i32
    %c0_i32_0 = arith.constant 0 : i32
    %1 = arith.addi %c0_i32_0, %0 : i32
    %c128_i32 = arith.constant 128 : i32
    %2 = arith.muli %1, %c128_i32 : i32
    %3 = tpu.assume_multiple %2, 128 : i32
    %4 = arith.index_cast %3 : i32 to index
    %c0 = arith.constant 0 : index
    %5 = vector.load %arg1[%4, %c0] : memref<128x27xf32, #tpu.memory_space<vmem>>, vector<128x27xf32>
    %6 = tpu.transpose %5, [1, 0] : vector<128x27xf32> -> vector<27x128xf32>
    %7 = vector.extract_strided_slice %6 {offsets = [0, 0], sizes = [6, 128], strides = [1, 1]} : vector<27x128xf32> to vector<6x128xf32>
    %c0_1 = arith.constant 0 : index
    %8 = arith.index_cast %3 : i32 to index
    %9 = vector.load %arg2[%c0_1, %8] : memref<27x128xf32, #tpu.memory_space<vmem>>, vector<6x128xf32>
    tpu.vector_store %arg2[%c0_1, %8], %7 {strides = array<i32>} : memref<27x128xf32, #tpu.memory_space<vmem>>, vector<6x128xf32>,
    %10 = vector.extract_strided_slice %6 {offsets = [6, 0], sizes = [6, 128], strides = [1, 1]} : vector<27x128xf32> to vector<6x128xf32>
    %cst = arith.constant 0.541324854 : f32
    %11 = vector.broadcast %cst : f32 to vector<6x128xf32>
    %12 = arith.addf %10, %11 : vector<6x128xf32>
    %cst_2 = arith.constant 0.000000e+00 : f32
    %13 = vector.broadcast %cst_2 : f32 to vector<6x128xf32>
    %14 = arith.maximumf %12, %13 : vector<6x128xf32>
    %15 = vector.broadcast %cst_2 : f32 to vector<6x128xf32>
    %16 = arith.subf %12, %15 : vector<6x128xf32>
    %17 = arith.cmpf one, %16, %16 : vector<6x128xf32>
    %18 = vector.broadcast %cst_2 : f32 to vector<6x128xf32>
    %19 = arith.addf %12, %18 : vector<6x128xf32>
    %20 = math.absf %16 : vector<6x128xf32>
    %cst_3 = arith.constant 0.000000e+00 : f32
    %21 = vector.broadcast %cst_3 : f32 to vector<6x128xf32>
    %22 = arith.subf %21, %20 : vector<6x128xf32>
    %23 = math.exp %22 : vector<6x128xf32>
    %24 = math.log1p %23 : vector<6x128xf32>
    %25 = arith.addf %14, %24 : vector<6x128xf32>
    %26 = arith.select %17, %19, %25 : vector<6x128xi1>, vector<6x128xf32>
    %cst_4 = arith.constant 0.00999999977 : f32
    %27 = vector.broadcast %cst_4 : f32 to vector<6x128xf32>
    %28 = arith.addf %26, %27 : vector<6x128xf32>
    %c6 = arith.constant 6 : index
    %29 = arith.index_cast %3 : i32 to index
    %30 = vector.load %arg2[%c6, %29] : memref<27x128xf32, #tpu.memory_space<vmem>>, vector<6x128xf32>
    tpu.vector_store %arg2[%c6, %29], %28 {strides = array<i32>} : memref<27x128xf32, #tpu.memory_space<vmem>>, vector<6x128xf32>,
    %31 = vector.extract_strided_slice %6 {offsets = [12, 0], sizes = [5, 128], strides = [1, 1]} : vector<27x128xf32> to vector<5x128xf32>
    %cst_5 = arith.constant dense<0.000000e+00> : vector<128xf32>
    %32 = vector.multi_reduction <add>, %31, %cst_5 [0] : vector<5x128xf32> to vector<128xf32>
    %33 = vector.shape_cast %32 : vector<128xf32> to vector<1x128xf32>
    %cst_6 = arith.constant 5.000000e+00 : f32
    %34 = vector.broadcast %cst_6 : f32 to vector<1x128xf32>
    %35 = arith.divf %33, %34 : vector<1x128xf32>
    %36 = vector.broadcast %35 : vector<1x128xf32> to vector<5x128xf32>
    %37 = arith.subf %31, %36 : vector<5x128xf32>
    %cst_7 = arith.constant -4.000000e+00 : f32
    %cst_8 = arith.constant 4.000000e+00 : f32
    %38 = vector.broadcast %cst_7 : f32 to vector<5x128xf32>
    %39 = arith.maximumf %38, %37 : vector<5x128xf32>
    %40 = vector.broadcast %cst_8 : f32 to vector<5x128xf32>
    %41 = arith.minimumf %40, %39 : vector<5x128xf32>
    %c12 = arith.constant 12 : index
    %42 = arith.index_cast %3 : i32 to index
    %43 = vector.load %arg2[%c12, %42] : memref<27x128xf32, #tpu.memory_space<vmem>>, vector<5x128xf32>
    tpu.vector_store %arg2[%c12, %42], %41 {strides = array<i32>} : memref<27x128xf32, #tpu.memory_space<vmem>>, vector<5x128xf32>,
    %44 = vector.extract_strided_slice %6 {offsets = [17, 0], sizes = [5, 128], strides = [1, 1]} : vector<27x128xf32> to vector<5x128xf32>
    %cst_9 = arith.constant dense<0.000000e+00> : vector<128xf32>
    %45 = vector.multi_reduction <add>, %44, %cst_9 [0] : vector<5x128xf32> to vector<128xf32>
    %46 = vector.shape_cast %45 : vector<128xf32> to vector<1x128xf32>
    %cst_10 = arith.constant 5.000000e+00 : f32
    %47 = vector.broadcast %cst_10 : f32 to vector<1x128xf32>
    %48 = arith.divf %46, %47 : vector<1x128xf32>
    %49 = vector.broadcast %48 : vector<1x128xf32> to vector<5x128xf32>
    %50 = arith.subf %44, %49 : vector<5x128xf32>
    %cst_11 = arith.constant -4.000000e+00 : f32
    %cst_12 = arith.constant 4.000000e+00 : f32
    %51 = vector.broadcast %cst_11 : f32 to vector<5x128xf32>
    %52 = arith.maximumf %51, %50 : vector<5x128xf32>
    %53 = vector.broadcast %cst_12 : f32 to vector<5x128xf32>
    %54 = arith.minimumf %53, %52 : vector<5x128xf32>
    %c17 = arith.constant 17 : index
    %55 = arith.index_cast %3 : i32 to index
    %56 = vector.load %arg2[%c17, %55] : memref<27x128xf32, #tpu.memory_space<vmem>>, vector<5x128xf32>
    tpu.vector_store %arg2[%c17, %55], %54 {strides = array<i32>} : memref<27x128xf32, #tpu.memory_space<vmem>>, vector<5x128xf32>,
    %57 = vector.extract_strided_slice %6 {offsets = [22, 0], sizes = [5, 128], strides = [1, 1]} : vector<27x128xf32> to vector<5x128xf32>
    %cst_13 = arith.constant dense<0.000000e+00> : vector<128xf32>
    %58 = vector.multi_reduction <add>, %57, %cst_13 [0] : vector<5x128xf32> to vector<128xf32>
    %59 = vector.shape_cast %58 : vector<128xf32> to vector<1x128xf32>
    %cst_14 = arith.constant 5.000000e+00 : f32
    %60 = vector.broadcast %cst_14 : f32 to vector<1x128xf32>
    %61 = arith.divf %59, %60 : vector<1x128xf32>
    %62 = vector.broadcast %61 : vector<1x128xf32> to vector<5x128xf32>
    %63 = arith.subf %57, %62 : vector<5x128xf32>
    %cst_15 = arith.constant -4.000000e+00 : f32
    %cst_16 = arith.constant 4.000000e+00 : f32
    %64 = vector.broadcast %cst_15 : f32 to vector<5x128xf32>
    %65 = arith.maximumf %64, %63 : vector<5x128xf32>
    %66 = vector.broadcast %cst_16 : f32 to vector<5x128xf32>
    %67 = arith.minimumf %66, %65 : vector<5x128xf32>
    %c22 = arith.constant 22 : index
    %68 = arith.index_cast %3 : i32 to index
    %69 = vector.load %arg2[%c22, %68] : memref<27x128xf32, #tpu.memory_space<vmem>>, vector<5x128xf32>
    tpu.vector_store %arg2[%c22, %68], %67 {strides = array<i32>} : memref<27x128xf32, #tpu.memory_space<vmem>>, vector<5x128xf32>,
    %c1_i32_17 = arith.constant 1 : i32
    return
  }
  func.func @transform_0(%arg0: i32) -> (i32, i32) {
    %c0_i32 = arith.constant 0 : i32
    %c0_i32_0 = arith.constant 0 : i32
    return %arg0, %c0_i32 : i32, i32
  }
  func.func @transform_1(%arg0: i32) -> (i32, i32) {
    %c0_i32 = arith.constant 0 : i32
    %c0_i32_0 = arith.constant 0 : i32
    return %c0_i32, %arg0 : i32, i32
  }
}

</mosaic_0001>

<llo_original>
// kernel: dict_action_head.1
$region0: #{dict_action_head.1}
  #allocation0 [shape = 'u32[]', space=smem, size = 0x4, offset = 0x4, fixed_abs, tag = 'smem constant byte address 0x4 - core index']
  #allocation1 [shape = 'u32[144,128]{1,0:T(1,128)}', space=vmem, size = 0x12000, scoped, tag = 'internal scratch']
  %s0 = inlined_call_operand.vmem [shape: f32[128,27], index: 0, kind: input, shape index: {}]
  %s1 = inlined_call_operand.vmem [shape: f32[27,128], index: 1, kind: output, shape index: {}]
  %s2 = sld [smem:[#allocation0]]
  $region14: #{dict_action_head.1} parent=0
    _
  %s4 = ssub.s32 1, %s2
  %s5 = scalar_select 0, %s4, %s2
  // Predicated region
  $region2: #{dict_action_head.1} parent=0 // pred_check
    _
  $region3: #{dict_action_head.1} parent=0 // pred_check_branch
    %7 = sbr.rel (0) target = $region5
  $region4: #{dict_action_head.1} parent=0 // pred_region
    _
  $region5: #{dict_action_head.1} parent=0 // pred_fallthru
    _
  %v8 = vld [vmem:[%s0] sm:$0xff]
  %v9 = vld [vmem:[%s0 + $0x8] sm:$0xff]
  %v10 = vld [vmem:[%s0 + $0x10] sm:$0xff]
  %v11 = vld [vmem:[%s0 + $0x18] sm:$0xff]
  %v12 = vld [vmem:[%s0 + $0x20] sm:$0xff]
  %v13 = vld [vmem:[%s0 + $0x28] sm:$0xff]
  %v14 = vld [vmem:[%s0 + $0x30] sm:$0xff]
  %v15 = vld [vmem:[%s0 + $0x38] sm:$0xff]
  %v16 = vld [vmem:[%s0 + $0x40] sm:$0xff]
  %v17 = vld [vmem:[%s0 + $0x48] sm:$0xff]
  %v18 = vld [vmem:[%s0 + $0x50] sm:$0xff]
  %v19 = vld [vmem:[%s0 + $0x58] sm:$0xff]
  %v20 = vld [vmem:[%s0 + $0x60] sm:$0xff]
  %v21 = vld [vmem:[%s0 + $0x68] sm:$0xff]
  %v22 = vld [vmem:[%s0 + $0x70] sm:$0xff]
  %v23 = vld [vmem:[%s0 + $0x78] sm:$0xff]
  %24 = vxpose.xlu0.b32.start [1/16] %v8, 128
  %25 = vxpose.xlu0.b32.cont [2/16] %v9, 128
  %26 = vxpose.xlu0.b32.cont [3/16] %v10, 128
  %27 = vxpose.xlu0.b32.cont [4/16] %v11, 128
  %28 = vxpose.xlu0.b32.cont [5/16] %v12, 128
  %29 = vxpose.xlu0.b32.cont [6/16] %v13, 128
  %30 = vxpose.xlu0.b32.cont [7/16] %v14, 128
  %31 = vxpose.xlu0.b32.cont [8/16] %v15, 128
  %32 = vxpose.xlu0.b32.cont [9/16] %v16, 128
  %33 = vxpose.xlu0.b32.cont [10/16] %v17, 128
  %34 = vxpose.xlu0.b32.cont [11/16] %v18, 128
  %35 = vxpose.xlu0.b32.cont [12/16] %v19, 128
  %36 = vxpose.xlu0.b32.cont [13/16] %v20, 128
  %37 = vxpose.xlu0.b32.cont [14/16] %v21, 128
  %38 = vxpose.xlu0.b32.cont [15/16] %v22, 128
  %39 = vxpose.xlu0.b32.end [16/16] %v23, 128
  %v40 = vpop.trf.xlu0
  %v41 = vpop.trf.xlu0
  %v42 = vpop.trf.xlu0
  %v43 = vpop.trf.xlu0
  %v44 = vpop.trf.xlu0
  %v45 = vpop.trf.xlu0
  %v46 = vpop.trf.xlu0
  %v47 = vpop.trf.xlu0
  %v48 = vpop.trf.xlu0
  %v49 = vpop.trf.xlu0
  %v50 = vpop.trf.xlu0
  %v51 = vpop.trf.xlu0
  %v52 = vpop.trf.xlu0
  %v53 = vpop.trf.xlu0
  %v54 = vpop.trf.xlu0
  %v55 = vpop.trf.xlu0
  %56 = vst [vmem:[%s1] sm:$0x3f] %v40
  %v57 = vadd.f32 %v40, 0.54132485
  %v58 = vadd.f32 %v41, 0.54132485
  %v59 = vmax.f32 %v57, 0.0
  %v60 = vmax.f32 %v58, 0.0
  %vm61 = vcmp.ne.f32.partialorder %v57, %v57
  %vm62 = vcmp.ne.f32.partialorder %v58, %v58
  %v63 = vadd.f32 %v57, 0.0
  %v64 = vadd.f32 %v58, 0.0
  %v65 = vand.u32 2147483647, %v57
  %v66 = vand.u32 2147483647, %v58
  %v67 = vsub.f32 0.0, %v65
  %v68 = vsub.f32 0.0, %v66
  %v69 = vmul.f32 %v67, 1.442695
  %v70 = vpow.pop %v69
  %v71 = vmul.f32 %v68, 1.442695
  %v72 = vpow.pop %v71
  %v73 = vadd.f32 %v70, 1.0
  %v74 = vlog2.pop %v73
  %v75 = vmul.f32 %v74, 0.6931472
  %v76 = vmul.f32 -0.5, %v70
  %v77 = vadd.f32 %v76, 1.0
  %v78 = vmul.f32 %v77, %v70
  %v79 = vand.u32 2147483647, %v70
  %vm80 = vcmp.lt.f32.partialorder %v79, 0.0004427343
  %v81 = vsel %vm80, %v78, %v75
  %v82 = vadd.f32 %v72, 1.0
  %v83 = vlog2.pop %v82
  %v84 = vmul.f32 %v83, 0.6931472
  %v85 = vmul.f32 -0.5, %v72
  %v86 = vadd.f32 %v85, 1.0
  %v87 = vmul.f32 %v86, %v72
  %v88 = vand.u32 2147483647, %v72
  %vm89 = vcmp.lt.f32.partialorder %v88, 0.0004427343
  %v90 = vsel %vm89, %v87, %v84
  %v91 = vadd.f32 %v59, %v81
  %v92 = vadd.f32 %v60, %v90
  %v93 = vsel %vm61, %v63, %v91
  %v94 = vsel %vm62, %v64, %v92
  %v95 = vadd.f32 %v93, 0.01
  %v96 = vadd.f32 %v94, 0.01
  %97 = vst [vmem:[%s1] sm:$0xc0] %v95
  %98 = vst [vmem:[%s1 + $0x8] sm:$0xf] %v96
  %vm101 = vcmask 1043456
  %v102 = vrot.slane %v41, 4
  %v103 = vrot.slane %v42, 4
  %v104 = vsel %vm101, %v102, %v103
  %vm106 = vcmask 1044480
  %v107 = vsel %vm106, %v104, 0.0
  %v108 = vrot.slane %v107, 4
  %v109 = vadd.f32 %v107, %v108
  %v110 = vrot.slane %v109, 2
  %v111 = vadd.f32 %v109, %v110
  %v112 = vrot.slane %v111, 1
  %v113 = vadd.f32 %v111, %v112
  %v114 = vrcp.pop 5.0
  %v115 = vmul.f32 %v113, %v114
  %v116 = vsub.f32 %v41, %v115
  %v117 = vsub.f32 %v42, %v115
  %v118 = vmax.f32 %v116, -4.0
  %v119 = vmax.f32 %v117, -4.0
  %v120 = vmin.f32 %v118, 4.0
  %v121 = vmin.f32 %v119, 4.0
  %122 = vst [vmem:[%s1 + $0x8] sm:$0xf0] %v120
  %123 = vst [vmem:[%s1 + $0x10] sm:$0x1] %v121
  %v124 = vrot.slane %v42, 1
  %v126 = vsel %vm106, %v124, 0.0
  %v127 = vrot.slane %v126, 4
  %v128 = vadd.f32 %v126, %v127
  %v129 = vrot.slane %v128, 2
  %v130 = vadd.f32 %v128, %v129
  %v131 = vrot.slane %v130, 1
  %v132 = vadd.f32 %v130, %v131
  %v133 = vmul.f32 %v132, %v114
  %v134 = vsub.f32 %v42, %v133
  %v135 = vmax.f32 %v134, -4.0
  %v136 = vmin.f32 %v135, 4.0
  %137 = vst [vmem:[%s1 + $0x10] sm:$0x3e] %v136
  %vm139 = vcmask 1041408
  %v140 = vrot.slane %v42, 6
  %v141 = vrot.slane %v43, 6
  %v142 = vsel %vm139, %v140, %v141
  %v144 = vsel %vm106, %v142, 0.0
  %v145 = vrot.slane %v144, 4
  %v146 = vadd.f32 %v144, %v145
  %v147 = vrot.slane %v146, 2
  %v148 = vadd.f32 %v146, %v147
  %v149 = vrot.slane %v148, 1
  %v150 = vadd.f32 %v148, %v149
  %v151 = vmul.f32 %v150, %v114
  %v152 = vsub.f32 %v42, %v151
  %v153 = vsub.f32 %v43, %v151
  %v154 = vmax.f32 %v152, -4.0
  %v155 = vmax.f32 %v153, -4.0
  %v156 = vmin.f32 %v154, 4.0
  %v157 = vmin.f32 %v155, 4.0
  %158 = vst [vmem:[%s1 + $0x10] sm:$0xc0] %v156
  %159 = vst [vmem:[%s1 + $0x18] sm:$0x7] %v157
  // Predicated region
  $region6: #{dict_action_head.1} parent=0 // pred_check
    _
  $region7: #{dict_action_head.1} parent=0 // pred_check_branch
    %161 = sbr.rel (0) target = $region9
  $region8: #{dict_action_head.1} parent=0 // pred_region
    _
  $region9: #{dict_action_head.1} parent=0 // pred_fallthru
    _
  // Predicated region
  $region10: #{dict_action_head.1} parent=0 // pred_check
    _
  $region11: #{dict_action_head.1} parent=0 // pred_check_branch
    %163 = sbr.rel (0) target = $region13
  $region12: #{dict_action_head.1} parent=0 // pred_region
    _
  $region13: #{dict_action_head.1} parent=0 // pred_fallthru
    _

</llo_original>
